<compile_context>
chip_gen: v7x
topology: tpu7x:2x2x1
jax: 0.10.0
libtpu: 0.0.40
codegen_flags: <defaults>
</compile_context>

<pallas_src>
import functools

import jax
import jax.numpy as jnp
from jax.experimental import pallas as pl
from jax.experimental.pallas import tpu as pltpu


def _round_up(x, m):
    return ((x + m - 1) // m) * m


def _cdiv(a, b):
    return -(-a // b)


# -----------------------------------------------------------------------------
# Kernels
# -----------------------------------------------------------------------------
def _qnet_resident_kernel(n_sup_layers, *refs):
    """One batch tile of the whole MLP; every weight stays resident in VMEM.

    Weights arrive pre-transposed to (in, out) layout in bf16; biases in f32.
    MXU accumulation is f32; bias add + ReLU are f32; activations go back to
    bf16 between layers so every matmul runs at bf16 MXU throughput.
    """
    if n_sup_layers > 0:
        x_ref, w1_ref, b1_ref, wm_ref, bm_ref, wl_ref, bl_ref, out_ref = refs
    else:
        x_ref, w1_ref, b1_ref, wl_ref, bl_ref, out_ref = refs
        wm_ref = bm_ref = None

    a = jnp.dot(x_ref[...], w1_ref[...], preferred_element_type=jnp.float32)
    h = jnp.maximum(a + b1_ref[...], 0.0).astype(jnp.bfloat16)

    if n_sup_layers > 0:
        if n_sup_layers <= 4:
            # Short fixed trip count: static unroll.
            for l in range(n_sup_layers):
                a = jnp.dot(h, wm_ref[l], preferred_element_type=jnp.float32)
                h = jnp.maximum(a + bm_ref[l], 0.0).astype(jnp.bfloat16)
        else:
            # Larger L: bounded live ranges, compact schedule.
            def body(l, h_c):
                a = jnp.dot(h_c, wm_ref[l], preferred_element_type=jnp.float32)
                return jnp.maximum(a + bm_ref[l], 0.0).astype(jnp.bfloat16)

            h = jax.lax.fori_loop(0, n_sup_layers, body, h, unroll=True)

    y = jnp.dot(h, wl_ref[...], preferred_element_type=jnp.float32)
    out_ref[...] = (y + bl_ref[...]).astype(out_ref.dtype)


def _qnet_stream_kernel(x_ref, w1_ref, b1_ref, wm_ref, bm_ref, wl_ref, bl_ref,
                        out_ref, h_ref):
    """Layer-streaming variant: grid = (batch_tiles, n_sup_layers).

    One (Hp, Hp) mid-layer weight block is DMA'd per grid step (pipeline
    double-buffers it behind the previous layer's matmul) while the activation
    tile is carried across the 'arbitrary' layer axis in a VMEM scratch.
    """
    l = pl.program_id(1)

    @pl.when(l == 0)
    def _():
        a = jnp.dot(x_ref[...], w1_ref[...], preferred_element_type=jnp.float32)
        h_ref[...] = jnp.maximum(a + b1_ref[...], 0.0).astype(h_ref.dtype)

    a = jnp.dot(h_ref[...], wm_ref[0], preferred_element_type=jnp.float32)
    h_ref[...] = jnp.maximum(a + bm_ref[0], 0.0).astype(h_ref.dtype)

    @pl.when(l == pl.num_programs(1) - 1)
    def _():
        y = jnp.dot(h_ref[...], wl_ref[...], preferred_element_type=jnp.float32)
        out_ref[...] = (y + bl_ref[...]).astype(out_ref.dtype)


# -----------------------------------------------------------------------------
# Wrapper
# -----------------------------------------------------------------------------
def _pick_batch_tiling(batch, tile_batch):
    """Even batch split, 16-row aligned (bf16 sublane packing), >=2 tiles when
    the batch is big enough so v7x's two TensorCores both get work."""
    b16 = _round_up(max(batch, 1), 16)
    n_tiles = max(_cdiv(b16, tile_batch), 1)
    if n_tiles == 1 and b16 >= 32:
        n_tiles = 2
    tb = _round_up(_cdiv(b16, n_tiles), 16)
    n_tiles = _cdiv(b16, tb)
    return tb, n_tiles * tb


def linear_qnet_forward(x, params, n_sup_layers, *, tile_batch=512,
                        stream_threshold_bytes=40 << 20,
                        force_stream_layers=False):
    """Full MLP forward as a single Pallas kernel, gridded over the batch.

    x:       (batch, input_size) float32
    params:  dict with w1 (H, I), b1 (1, H), wl (O, H), bl (1, O) and, when
             n_sup_layers > 0, wm (L, H, H), bm (L, 1, H)  (PyTorch layout).
    """
    batch, input_size = x.shape
    hidden_size = params["w1"].shape[0]
    output_size = params["wl"].shape[0]
    L = int(n_sup_layers)

    K = input_size                       # feature dim stays unpadded in HBM
    Hp = _round_up(hidden_size, 128)
    Op = _round_up(output_size, 128)
    TB, B_pad = _pick_batch_tiling(batch, tile_batch)
    n_tiles = B_pad // TB

    wdt = jnp.bfloat16
    # Batch rows padded with zeros (sliced off at the end); feature dim untouched.
    x_p = jnp.pad(x, ((0, B_pad - batch), (0, 0))).astype(wdt)

    # Pre-transpose to (in, out), zero-pad feature lanes to 128, cast to bf16.
    # Zero padding is inert: padded hidden lanes get zero weight rows/cols and
    # zero bias, so they stay zero through every ReLU; padded output lanes are
    # sliced off outside.
    w1t = jnp.pad(params["w1"].T, ((0, 0), (0, Hp - hidden_size))).astype(wdt)
    b1 = jnp.pad(params["b1"], ((0, 0), (0, Hp - hidden_size))).astype(jnp.float32)
    wlt = jnp.pad(params["wl"].T,
                  ((0, Hp - hidden_size), (0, Op - output_size))).astype(wdt)
    bl = jnp.pad(params["bl"], ((0, 0), (0, Op - output_size))).astype(jnp.float32)
    if L > 0:
        wmt = jnp.pad(jnp.transpose(params["wm"], (0, 2, 1)),
                      ((0, 0), (0, Hp - hidden_size),
                       (0, Hp - hidden_size))).astype(wdt)
        bm = jnp.pad(params["bm"],
                     ((0, 0), (0, 0), (0, Hp - hidden_size))).astype(jnp.float32)

    # Resident mid-layer weights fit comfortably on v5e/v6e (128 MiB VMEM); on
    # v7x (64 MiB/TC) stream them layer-by-layer once they get large.
    mid_weight_bytes = 2 * L * Hp * Hp
    stream = L > 0 and (force_stream_layers
                        or mid_weight_bytes > stream_threshold_bytes)

    try:
        vmem_cap = int(pltpu.get_tpu_info().vmem_capacity_bytes)
    except Exception:
        vmem_cap = 64 << 20              # v7x-safe default

    def build(single_buffer_weights):
        # Constant-index (resident) specs: single-buffer to halve VMEM use.
        pm = {"pipeline_mode": pl.Buffered(1)} if single_buffer_weights else {}

        if not stream:
            const2 = lambda i: (0, 0)
            const3 = lambda i: (0, 0, 0)
            args = [x_p, w1t, b1]
            in_specs = [
                pl.BlockSpec((TB, K), lambda i: (i, 0)),      # streamed x tile
                pl.BlockSpec((K, Hp), const2, **pm),          # resident weights
                pl.BlockSpec((1, Hp), const2, **pm),
            ]
            if L > 0:
                args += [wmt, bm]
                in_specs += [
                    pl.BlockSpec((L, Hp, Hp), const3, **pm),
                    pl.BlockSpec((L, 1, Hp), const3, **pm),
                ]
            args += [wlt, bl]
            in_specs += [
                pl.BlockSpec((Hp, Op), const2, **pm),
                pl.BlockSpec((1, Op), const2, **pm),
            ]
            grid = (n_tiles,)
            out_specs = pl.BlockSpec((TB, Op), lambda i: (i, 0))
            scratch_shapes = ()
            sem = ("parallel",)
            kernel = functools.partial(_qnet_resident_kernel, L)
            wmem = (2 * (K * Hp + L * Hp * Hp + Hp * Op)        # bf16 weights
                    + 4 * (Hp + L * Hp + Op))                   # f32 biases
            if not single_buffer_weights:
                wmem *= 2
        else:
            const2 = lambda i, l: (0, 0)
            args = [x_p, w1t, b1, wmt, bm, wlt, bl]
            in_specs = [
                pl.BlockSpec((TB, K), lambda i, l: (i, 0)),
                pl.BlockSpec((K, Hp), const2, **pm),
                pl.BlockSpec((1, Hp), const2, **pm),
                pl.BlockSpec((1, Hp, Hp), lambda i, l: (l, 0, 0)),  # streamed
                pl.BlockSpec((1, 1, Hp), lambda i, l: (l, 0, 0)),   # streamed
                pl.BlockSpec((Hp, Op), const2, **pm),
                pl.BlockSpec((1, Op), const2, **pm),
            ]
            grid = (n_tiles, L)
            out_specs = pl.BlockSpec((TB, Op), lambda i, l: (i, 0))
            scratch_shapes = (pltpu.VMEM((TB, Hp), jnp.bfloat16),)
            sem = ("parallel", "arbitrary")
            kernel = _qnet_stream_kernel
            wmem = (2 * (K * Hp + Hp * Op) + 4 * (Hp + Op)      # resident first/last
                    + 2 * (2 * Hp * Hp + 4 * Hp)                # dbl-buffered layer
                    + 2 * TB * Hp)                              # activation scratch
            if not single_buffer_weights:
                wmem += 2 * (K * Hp + Hp * Op) + 4 * (Hp + Op)

        io_bytes = 2 * (TB * K * 2 + TB * Op * 4)   # double-buffered x / out tiles
        act_bytes = 6 * TB * Hp                     # f32 + bf16 activation slack
        vmem_limit = int(min(max(wmem + io_bytes + act_bytes + (8 << 20),
                                 16 << 20),
                             int(vmem_cap * 0.75)))

        call = pl.pallas_call(
            kernel,
            out_shape=jax.ShapeDtypeStruct((B_pad, Op), jnp.float32),
            grid=grid,
            in_specs=in_specs,
            out_specs=out_specs,
            scratch_shapes=scratch_shapes,
            compiler_params=pltpu.CompilerParams(
                dimension_semantics=sem,
                vmem_limit_bytes=vmem_limit,
            ),
        )
        return call, args

    try:
        call, args = build(single_buffer_weights=True)
        out_p = call(*args)
    except Exception:
        # Fallback if this JAX build rejects pipeline_mode=pl.Buffered(1).
        call, args = build(single_buffer_weights=False)
        out_p = call(*args)

    # TODO(synk): for extremely large L*Hp*Hp that exceed even the streamed
    # budget, add a K-split over Hp inside the streamed matmul.
    return out_p[:batch, :output_size].astype(jnp.float32)


# -----------------------------------------------------------------------------
# Reference + init (PyTorch-style)
# -----------------------------------------------------------------------------
def init_params(key, input_size, hidden_size, output_size, n_sup_layers):
    """Deterministic PyTorch-style init: U(-1/sqrt(fan_in), 1/sqrt(fan_in))."""
    ks = jax.random.split(key, 6)

    def uniform(k, shape, fan_in):
        bound = 1.0 / jnp.sqrt(jnp.float32(fan_in))
        return jax.random.uniform(k, shape, jnp.float32, -bound, bound)

    params = {
        "w1": uniform(ks[0], (hidden_size, input_size), input_size),
        "b1": uniform(ks[1], (1, hidden_size), input_size),
        "wl": uniform(ks[4], (output_size, hidden_size), hidden_size),
        "bl": uniform(ks[5], (1, output_size), hidden_size),
    }
    if n_sup_layers > 0:
        params["wm"] = uniform(ks[2], (n_sup_layers, hidden_size, hidden_size),
                               hidden_size)
        params["bm"] = uniform(ks[3], (n_sup_layers, 1, hidden_size), hidden_size)
    return params


def reference_forward(x, params, n_sup_layers):
    h = jnp.maximum(x @ params["w1"].T + params["b1"], 0.0)
    for l in range(n_sup_layers):
        h = jnp.maximum(h @ params["wm"][l].T + params["bm"][l], 0.0)
    return h @ params["wl"].T + params["bl"]


if __name__ == "__main__":
    # Small shapes consistent with the module (snake-DQN-like sizes).
    batch = 8
    input_size = 11
    hidden_size = 32
    output_size = 3
    n_sup_layers = 2

    key = jax.random.PRNGKey(0)
    kx, kp = jax.random.split(key)
    x = jax.random.normal(kx, (batch, input_size), dtype=jnp.float32)
    params = init_params(kp, input_size, hidden_size, output_size, n_sup_layers)

    ref = reference_forward(x, params, n_sup_layers)

    # Resident-weights path (default).
    out = jax.block_until_ready(linear_qnet_forward(x, params, n_sup_layers))
    assert out.shape == (batch, output_size)
    # bf16 weight/activation storage -> looser tolerance vs the fp32 reference.
    assert jnp.allclose(out, ref, atol=5e-2, rtol=5e-2), \
        float(jnp.max(jnp.abs(out - ref)))

    # 0-mid-layer path (no wm/bm arrays created or DMA'd).
    params0 = init_params(kp, input_size, hidden_size, output_size, 0)
    out0 = jax.block_until_ready(linear_qnet_forward(x, params0, 0))
    ref0 = reference_forward(x, params0, 0)
    assert jnp.allclose(out0, ref0, atol=5e-2, rtol=5e-2), \
        float(jnp.max(jnp.abs(out0 - ref0)))

    # Layer-streaming fallback (v7x large-hidden path), forced at small shapes
    # so it is exercised and verified too.
    outs = jax.block_until_ready(
        linear_qnet_forward(x, params, n_sup_layers, force_stream_layers=True))
    assert jnp.allclose(outs, ref, atol=5e-2, rtol=5e-2), \
        float(jnp.max(jnp.abs(outs - ref)))

    print("KERNEL_OK")
</pallas_src>

<mosaic_0001>
module attributes {stable_mosaic.version = 11 : i64} {
  func.func @_qnet_resident_kernel(%arg0: i32, %arg1: memref<16x11xbf16, #tpu.memory_space<vmem>>, %arg2: memref<11x128xbf16, #tpu.memory_space<vmem>>, %arg3: memref<1x128xf32, #tpu.memory_space<vmem>>, %arg4: memref<2x128x128xbf16, #tpu.memory_space<vmem>>, %arg5: memref<2x1x128xf32, #tpu.memory_space<vmem>>, %arg6: memref<128x128xbf16, #tpu.memory_space<vmem>>, %arg7: memref<1x128xf32, #tpu.memory_space<vmem>>, %arg8: memref<16x128xf32, #tpu.memory_space<vmem>>) attributes {dimension_semantics = [#tpu.dimension_semantics<parallel>], iteration_bounds = array<i64: 1>, scalar_prefetch = 0 : i64, scratch_operands = 0 : i64, tpu.core_type = #tpu.core_type<tc>, window_params = [{transform_indices = @transform_0, window_bounds = array<i64: 16, 11>}, {pipeline_mode = #tpu.pipeline_mode<synchronous>, transform_indices = @transform_1, window_bounds = array<i64: 11, 128>}, {pipeline_mode = #tpu.pipeline_mode<synchronous>, transform_indices = @transform_2, window_bounds = array<i64: 1, 128>}, {pipeline_mode = #tpu.pipeline_mode<synchronous>, transform_indices = @transform_3, window_bounds = array<i64: 2, 128, 128>}, {pipeline_mode = #tpu.pipeline_mode<synchronous>, transform_indices = @transform_4, window_bounds = array<i64: 2, 1, 128>}, {pipeline_mode = #tpu.pipeline_mode<synchronous>, transform_indices = @transform_5, window_bounds = array<i64: 128, 128>}, {pipeline_mode = #tpu.pipeline_mode<synchronous>, transform_indices = @transform_6, window_bounds = array<i64: 1, 128>}, {transform_indices = @transform_7, window_bounds = array<i64: 16, 128>}]} {
    %c0 = arith.constant 0 : index
    %c0_0 = arith.constant 0 : index
    %0 = vector.load %arg1[%c0, %c0_0] : memref<16x11xbf16, #tpu.memory_space<vmem>>, vector<16x11xbf16>
    %c0_1 = arith.constant 0 : index
    %c0_2 = arith.constant 0 : index
    %1 = vector.load %arg2[%c0_1, %c0_2] : memref<11x128xbf16, #tpu.memory_space<vmem>>, vector<11x128xbf16>
    %cst = arith.constant dense<0.000000e+00> : vector<16x128xf32>
    %2 = tpu.matmul %0, %1, %cst {dimension_numbers = #tpu.dot_dimension_numbers<[1], [0], [0], [1], [0, 0, 1, 1], [], []>} : vector<16x11xbf16>, vector<11x128xbf16>, vector<16x128xf32> -> vector<16x128xf32>
    %c0_3 = arith.constant 0 : index
    %c0_4 = arith.constant 0 : index
    %3 = vector.load %arg3[%c0_3, %c0_4] : memref<1x128xf32, #tpu.memory_space<vmem>>, vector<1x128xf32>
    %4 = vector.broadcast %3 : vector<1x128xf32> to vector<16x128xf32>
    %5 = arith.addf %2, %4 : vector<16x128xf32>
    %cst_5 = arith.constant 0.000000e+00 : f32
    %6 = vector.broadcast %cst_5 : f32 to vector<16x128xf32>
    %7 = arith.maximumf %5, %6 : vector<16x128xf32>
    %8 = arith.truncf %7 : vector<16x128xf32> to vector<16x128xbf16>
    %c0_6 = arith.constant 0 : index
    %c0_7 = arith.constant 0 : index
    %c0_8 = arith.constant 0 : index
    %9 = vector.load %arg4[%c0_6, %c0_7, %c0_8] : memref<2x128x128xbf16, #tpu.memory_space<vmem>>, vector<1x128x128xbf16>
    %10 = vector.shape_cast %9 : vector<1x128x128xbf16> to vector<128x128xbf16>
    %cst_9 = arith.constant dense<0.000000e+00> : vector<16x128xf32>
    %11 = tpu.matmul %8, %10, %cst_9 {dimension_numbers = #tpu.dot_dimension_numbers<[1], [0], [0], [1], [0, 0, 1, 1], [], []>} : vector<16x128xbf16>, vector<128x128xbf16>, vector<16x128xf32> -> vector<16x128xf32>
    %c0_10 = arith.constant 0 : index
    %c0_11 = arith.constant 0 : index
    %c0_12 = arith.constant 0 : index
    %12 = vector.load %arg5[%c0_10, %c0_11, %c0_12] : memref<2x1x128xf32, #tpu.memory_space<vmem>>, vector<1x1x128xf32>
    %13 = vector.shape_cast %12 : vector<1x1x128xf32> to vector<1x128xf32>
    %14 = vector.broadcast %13 : vector<1x128xf32> to vector<16x128xf32>
    %15 = arith.addf %11, %14 : vector<16x128xf32>
    %cst_13 = arith.constant 0.000000e+00 : f32
    %16 = vector.broadcast %cst_13 : f32 to vector<16x128xf32>
    %17 = arith.maximumf %15, %16 : vector<16x128xf32>
    %18 = arith.truncf %17 : vector<16x128xf32> to vector<16x128xbf16>
    %c1 = arith.constant 1 : index
    %c0_14 = arith.constant 0 : index
    %c0_15 = arith.constant 0 : index
    %19 = vector.load %arg4[%c1, %c0_14, %c0_15] : memref<2x128x128xbf16, #tpu.memory_space<vmem>>, vector<1x128x128xbf16>
    %20 = vector.shape_cast %19 : vector<1x128x128xbf16> to vector<128x128xbf16>
    %cst_16 = arith.constant dense<0.000000e+00> : vector<16x128xf32>
    %21 = tpu.matmul %18, %20, %cst_16 {dimension_numbers = #tpu.dot_dimension_numbers<[1], [0], [0], [1], [0, 0, 1, 1], [], []>} : vector<16x128xbf16>, vector<128x128xbf16>, vector<16x128xf32> -> vector<16x128xf32>
    %c1_17 = arith.constant 1 : index
    %c0_18 = arith.constant 0 : index
    %c0_19 = arith.constant 0 : index
    %22 = vector.load %arg5[%c1_17, %c0_18, %c0_19] : memref<2x1x128xf32, #tpu.memory_space<vmem>>, vector<1x1x128xf32>
    %23 = vector.shape_cast %22 : vector<1x1x128xf32> to vector<1x128xf32>
    %24 = vector.broadcast %23 : vector<1x128xf32> to vector<16x128xf32>
    %25 = arith.addf %21, %24 : vector<16x128xf32>
    %cst_20 = arith.constant 0.000000e+00 : f32
    %26 = vector.broadcast %cst_20 : f32 to vector<16x128xf32>
    %27 = arith.maximumf %25, %26 : vector<16x128xf32>
    %28 = arith.truncf %27 : vector<16x128xf32> to vector<16x128xbf16>
    %c0_21 = arith.constant 0 : index
    %c0_22 = arith.constant 0 : index
    %29 = vector.load %arg6[%c0_21, %c0_22] : memref<128x128xbf16, #tpu.memory_space<vmem>>, vector<128x128xbf16>
    %cst_23 = arith.constant dense<0.000000e+00> : vector<16x128xf32>
    %30 = tpu.matmul %28, %29, %cst_23 {dimension_numbers = #tpu.dot_dimension_numbers<[1], [0], [0], [1], [0, 0, 1, 1], [], []>} : vector<16x128xbf16>, vector<128x128xbf16>, vector<16x128xf32> -> vector<16x128xf32>
    %c0_24 = arith.constant 0 : index
    %c0_25 = arith.constant 0 : index
    %31 = vector.load %arg7[%c0_24, %c0_25] : memref<1x128xf32, #tpu.memory_space<vmem>>, vector<1x128xf32>
    %32 = vector.broadcast %31 : vector<1x128xf32> to vector<16x128xf32>
    %33 = arith.addf %30, %32 : vector<16x128xf32>
    %c0_26 = arith.constant 0 : index
    %c0_27 = arith.constant 0 : index
    %34 = vector.load %arg8[%c0_26, %c0_27] : memref<16x128xf32, #tpu.memory_space<vmem>>, vector<16x128xf32>
    tpu.vector_store %arg8[%c0_26, %c0_27], %33 {strides = array<i32>} : memref<16x128xf32, #tpu.memory_space<vmem>>, vector<16x128xf32>,
    return
  }
  func.func @transform_0(%arg0: i32) -> (i32, i32) {
    %c0_i32 = arith.constant 0 : i32
    %c0_i32_0 = arith.constant 0 : i32
    return %arg0, %c0_i32 : i32, i32
  }
  func.func @transform_1(%arg0: i32) -> (i32, i32) {
    %c0_i32 = arith.constant 0 : i32
    %c0_i32_0 = arith.constant 0 : i32
    %c0_i32_1 = arith.constant 0 : i32
    return %c0_i32, %c0_i32_0 : i32, i32
  }
  func.func @transform_2(%arg0: i32) -> (i32, i32) {
    %c0_i32 = arith.constant 0 : i32
    %c0_i32_0 = arith.constant 0 : i32
    %c0_i32_1 = arith.constant 0 : i32
    return %c0_i32, %c0_i32_0 : i32, i32
  }
  func.func @transform_3(%arg0: i32) -> (i32, i32, i32) {
    %c0_i32 = arith.constant 0 : i32
    %c0_i32_0 = arith.constant 0 : i32
    %c0_i32_1 = arith.constant 0 : i32
    %c0_i32_2 = arith.constant 0 : i32
    return %c0_i32, %c0_i32_0, %c0_i32_1 : i32, i32, i32
  }
  func.func @transform_4(%arg0: i32) -> (i32, i32, i32) {
    %c0_i32 = arith.constant 0 : i32
    %c0_i32_0 = arith.constant 0 : i32
    %c0_i32_1 = arith.constant 0 : i32
    %c0_i32_2 = arith.constant 0 : i32
    return %c0_i32, %c0_i32_0, %c0_i32_1 : i32, i32, i32
  }
  func.func @transform_5(%arg0: i32) -> (i32, i32) {
    %c0_i32 = arith.constant 0 : i32
    %c0_i32_0 = arith.constant 0 : i32
    %c0_i32_1 = arith.constant 0 : i32
    return %c0_i32, %c0_i32_0 : i32, i32
  }
  func.func @transform_6(%arg0: i32) -> (i32, i32) {
    %c0_i32 = arith.constant 0 : i32
    %c0_i32_0 = arith.constant 0 : i32
    %c0_i32_1 = arith.constant 0 : i32
    return %c0_i32, %c0_i32_0 : i32, i32
  }
  func.func @transform_7(%arg0: i32) -> (i32, i32) {
    %c0_i32 = arith.constant 0 : i32
    %c0_i32_0 = arith.constant 0 : i32
    return %arg0, %c0_i32 : i32, i32
  }
}

module attributes {stable_mosaic.version = 11 : i64} {
  func.func @_qnet_resident_kernel(%arg0: i32, %arg1: memref<16x11xbf16, #tpu.memory_space<vmem>>, %arg2: memref<11x128xbf16, #tpu.memory_space<vmem>>, %arg3: memref<1x128xf32, #tpu.memory_space<vmem>>, %arg4: memref<2x128x128xbf16, #tpu.memory_space<vmem>>, %arg5: memref<2x1x128xf32, #tpu.memory_space<vmem>>, %arg6: memref<128x128xbf16, #tpu.memory_space<vmem>>, %arg7: memref<1x128xf32, #tpu.memory_space<vmem>>, %arg8: memref<16x128xf32, #tpu.memory_space<vmem>>) attributes {dimension_semantics = [#tpu.dimension_semantics<parallel>], iteration_bounds = array<i64: 1>, scalar_prefetch = 0 : i64, scratch_operands = 0 : i64, tpu.core_type = #tpu.core_type<tc>, window_params = [{transform_indices = @transform_0, window_bounds = array<i64: 16, 11>}, {pipeline_mode = #tpu.pipeline_mode<synchronous>, transform_indices = @transform_1, window_bounds = array<i64: 11, 128>}, {pipeline_mode = #tpu.pipeline_mode<synchronous>, transform_indices = @transform_2, window_bounds = array<i64: 1, 128>}, {pipeline_mode = #tpu.pipeline_mode<synchronous>, transform_indices = @transform_3, window_bounds = array<i64: 2, 128, 128>}, {pipeline_mode = #tpu.pipeline_mode<synchronous>, transform_indices = @transform_4, window_bounds = array<i64: 2, 1, 128>}, {pipeline_mode = #tpu.pipeline_mode<synchronous>, transform_indices = @transform_5, window_bounds = array<i64: 128, 128>}, {pipeline_mode = #tpu.pipeline_mode<synchronous>, transform_indices = @transform_6, window_bounds = array<i64: 1, 128>}, {transform_indices = @transform_7, window_bounds = array<i64: 16, 128>}]} {
    %c0 = arith.constant 0 : index
    %c0_0 = arith.constant 0 : index
    %0 = vector.load %arg1[%c0, %c0_0] : memref<16x11xbf16, #tpu.memory_space<vmem>>, vector<16x11xbf16>
    %c0_1 = arith.constant 0 : index
    %c0_2 = arith.constant 0 : index
    %1 = vector.load %arg2[%c0_1, %c0_2] : memref<11x128xbf16, #tpu.memory_space<vmem>>, vector<11x128xbf16>
    %cst = arith.constant dense<0.000000e+00> : vector<16x128xf32>
    %2 = tpu.matmul %0, %1, %cst {dimension_numbers = #tpu.dot_dimension_numbers<[1], [0], [0], [1], [0, 0, 1, 1], [], []>} : vector<16x11xbf16>, vector<11x128xbf16>, vector<16x128xf32> -> vector<16x128xf32>
    %c0_3 = arith.constant 0 : index
    %c0_4 = arith.constant 0 : index
    %3 = vector.load %arg3[%c0_3, %c0_4] : memref<1x128xf32, #tpu.memory_space<vmem>>, vector<1x128xf32>
    %4 = vector.broadcast %3 : vector<1x128xf32> to vector<16x128xf32>
    %5 = arith.addf %2, %4 : vector<16x128xf32>
    %cst_5 = arith.constant 0.000000e+00 : f32
    %6 = vector.broadcast %cst_5 : f32 to vector<16x128xf32>
    %7 = arith.maximumf %5, %6 : vector<16x128xf32>
    %8 = arith.truncf %7 : vector<16x128xf32> to vector<16x128xbf16>
    %c0_6 = arith.constant 0 : index
    %c0_7 = arith.constant 0 : index
    %c0_8 = arith.constant 0 : index
    %9 = vector.load %arg4[%c0_6, %c0_7, %c0_8] : memref<2x128x128xbf16, #tpu.memory_space<vmem>>, vector<1x128x128xbf16>
    %10 = vector.shape_cast %9 : vector<1x128x128xbf16> to vector<128x128xbf16>
    %cst_9 = arith.constant dense<0.000000e+00> : vector<16x128xf32>
    %11 = tpu.matmul %8, %10, %cst_9 {dimension_numbers = #tpu.dot_dimension_numbers<[1], [0], [0], [1], [0, 0, 1, 1], [], []>} : vector<16x128xbf16>, vector<128x128xbf16>, vector<16x128xf32> -> vector<16x128xf32>
    %c0_10 = arith.constant 0 : index
    %c0_11 = arith.constant 0 : index
    %c0_12 = arith.constant 0 : index
    %12 = vector.load %arg5[%c0_10, %c0_11, %c0_12] : memref<2x1x128xf32, #tpu.memory_space<vmem>>, vector<1x1x128xf32>
    %13 = vector.shape_cast %12 : vector<1x1x128xf32> to vector<1x128xf32>
    %14 = vector.broadcast %13 : vector<1x128xf32> to vector<16x128xf32>
    %15 = arith.addf %11, %14 : vector<16x128xf32>
    %cst_13 = arith.constant 0.000000e+00 : f32
    %16 = vector.broadcast %cst_13 : f32 to vector<16x128xf32>
    %17 = arith.maximumf %15, %16 : vector<16x128xf32>
    %18 = arith.truncf %17 : vector<16x128xf32> to vector<16x128xbf16>
    %c1 = arith.constant 1 : index
    %c0_14 = arith.constant 0 : index
    %c0_15 = arith.constant 0 : index
    %19 = vector.load %arg4[%c1, %c0_14, %c0_15] : memref<2x128x128xbf16, #tpu.memory_space<vmem>>, vector<1x128x128xbf16>
    %20 = vector.shape_cast %19 : vector<1x128x128xbf16> to vector<128x128xbf16>
    %cst_16 = arith.constant dense<0.000000e+00> : vector<16x128xf32>
    %21 = tpu.matmul %18, %20, %cst_16 {dimension_numbers = #tpu.dot_dimension_numbers<[1], [0], [0], [1], [0, 0, 1, 1], [], []>} : vector<16x128xbf16>, vector<128x128xbf16>, vector<16x128xf32> -> vector<16x128xf32>
    %c1_17 = arith.constant 1 : index
    %c0_18 = arith.constant 0 : index
    %c0_19 = arith.constant 0 : index
    %22 = vector.load %arg5[%c1_17, %c0_18, %c0_19] : memref<2x1x128xf32, #tpu.memory_space<vmem>>, vector<1x1x128xf32>
    %23 = vector.shape_cast %22 : vector<1x1x128xf32> to vector<1x128xf32>
    %24 = vector.broadcast %23 : vector<1x128xf32> to vector<16x128xf32>
    %25 = arith.addf %21, %24 : vector<16x128xf32>
    %cst_20 = arith.constant 0.000000e+00 : f32
    %26 = vector.broadcast %cst_20 : f32 to vector<16x128xf32>
    %27 = arith.maximumf %25, %26 : vector<16x128xf32>
    %28 = arith.truncf %27 : vector<16x128xf32> to vector<16x128xbf16>
    %c0_21 = arith.constant 0 : index
    %c0_22 = arith.constant 0 : index
    %29 = vector.load %arg6[%c0_21, %c0_22] : memref<128x128xbf16, #tpu.memory_space<vmem>>, vector<128x128xbf16>
    %cst_23 = arith.constant dense<0.000000e+00> : vector<16x128xf32>
    %30 = tpu.matmul %28, %29, %cst_23 {dimension_numbers = #tpu.dot_dimension_numbers<[1], [0], [0], [1], [0, 0, 1, 1], [], []>} : vector<16x128xbf16>, vector<128x128xbf16>, vector<16x128xf32> -> vector<16x128xf32>
    %c0_24 = arith.constant 0 : index
    %c0_25 = arith.constant 0 : index
    %31 = vector.load %arg7[%c0_24, %c0_25] : memref<1x128xf32, #tpu.memory_space<vmem>>, vector<1x128xf32>
    %32 = vector.broadcast %31 : vector<1x128xf32> to vector<16x128xf32>
    %33 = arith.addf %30, %32 : vector<16x128xf32>
    %c0_26 = arith.constant 0 : index
    %c0_27 = arith.constant 0 : index
    %34 = vector.load %arg8[%c0_26, %c0_27] : memref<16x128xf32, #tpu.memory_space<vmem>>, vector<16x128xf32>
    tpu.vector_store %arg8[%c0_26, %c0_27], %33 {strides = array<i32>} : memref<16x128xf32, #tpu.memory_space<vmem>>, vector<16x128xf32>,
    return
  }
  func.func @transform_0(%arg0: i32) -> (i32, i32) {
    %c0_i32 = arith.constant 0 : i32
    %c0_i32_0 = arith.constant 0 : i32
    return %arg0, %c0_i32 : i32, i32
  }
  func.func @transform_1(%arg0: i32) -> (i32, i32) {
    %c0_i32 = arith.constant 0 : i32
    %c0_i32_0 = arith.constant 0 : i32
    %c0_i32_1 = arith.constant 0 : i32
    return %c0_i32, %c0_i32_0 : i32, i32
  }
  func.func @transform_2(%arg0: i32) -> (i32, i32) {
    %c0_i32 = arith.constant 0 : i32
    %c0_i32_0 = arith.constant 0 : i32
    %c0_i32_1 = arith.constant 0 : i32
    return %c0_i32, %c0_i32_0 : i32, i32
  }
  func.func @transform_3(%arg0: i32) -> (i32, i32, i32) {
    %c0_i32 = arith.constant 0 : i32
    %c0_i32_0 = arith.constant 0 : i32
    %c0_i32_1 = arith.constant 0 : i32
    %c0_i32_2 = arith.constant 0 : i32
    return %c0_i32, %c0_i32_0, %c0_i32_1 : i32, i32, i32
  }
  func.func @transform_4(%arg0: i32) -> (i32, i32, i32) {
    %c0_i32 = arith.constant 0 : i32
    %c0_i32_0 = arith.constant 0 : i32
    %c0_i32_1 = arith.constant 0 : i32
    %c0_i32_2 = arith.constant 0 : i32
    return %c0_i32, %c0_i32_0, %c0_i32_1 : i32, i32, i32
  }
  func.func @transform_5(%arg0: i32) -> (i32, i32) {
    %c0_i32 = arith.constant 0 : i32
    %c0_i32_0 = arith.constant 0 : i32
    %c0_i32_1 = arith.constant 0 : i32
    return %c0_i32, %c0_i32_0 : i32, i32
  }
  func.func @transform_6(%arg0: i32) -> (i32, i32) {
    %c0_i32 = arith.constant 0 : i32
    %c0_i32_0 = arith.constant 0 : i32
    %c0_i32_1 = arith.constant 0 : i32
    return %c0_i32, %c0_i32_0 : i32, i32
  }
  func.func @transform_7(%arg0: i32) -> (i32, i32) {
    %c0_i32 = arith.constant 0 : i32
    %c0_i32_0 = arith.constant 0 : i32
    return %arg0, %c0_i32 : i32, i32
  }
}

</mosaic_0001>

<llo_original>
// kernel: tpu_custom_call.1
$region0: #{tpu_custom_call.1}
  #allocation0 [shape = 'u32[]', space=smem, size = 0x4, offset = 0x4, fixed_abs, tag = 'smem constant byte address 0x4 - core index']
  #allocation1 [shape = 'u32[144,128]{1,0:T(1,128)}', space=vmem, size = 0x12000, scoped, tag = 'internal scratch']
  %s0 = inlined_call_operand.hbm [shape: bf16[16,11], index: 0, kind: input, shape index: {}]
  %s1 = inlined_call_operand.hbm [shape: bf16[11,128], index: 1, kind: input, shape index: {}]
  %s2 = inlined_call_operand.vmem [shape: f32[1,128], index: 2, kind: input, shape index: {}]
  %s3 = inlined_call_operand.hbm [shape: bf16[2,128,128], index: 3, kind: input, shape index: {}]
  %s4 = inlined_call_operand.vmem [shape: f32[2,1,128], index: 4, kind: input, shape index: {}]
  %s5 = inlined_call_operand.hbm [shape: bf16[128,128], index: 5, kind: input, shape index: {}]
  %s6 = inlined_call_operand.vmem [shape: f32[1,128], index: 6, kind: input, shape index: {}]
  %s7 = inlined_call_operand.hbm [shape: f32[16,128], index: 7, kind: output, shape index: {}]
  %s8 = sld [smem:[#allocation0]]
  $region54: #{tpu_custom_call.1} parent=0
    _
  %s10 = ssub.s32 1, %s8
  %s11 = scalar_select 0, %s10, %s8
  $region1: #{tpu_custom_call.1} parent=0
    #allocation2 [shape = 'u8[4096]{0}', space=vmem, size = 0x1000, scoped, tag = 'input window, operand 0, single buffered']
    #allocation3 [shape = 's32[1]{0}', space=sflag, size = 0x4, scoped, tag = 'scoped memory for tpu_custom_call.1']
    #allocation4 [shape = 's32[1]{0}', space=sflag, size = 0x4, scoped, tag = 'scoped memory for tpu_custom_call.1']
    #allocation5 [shape = 'u8[4096]{0}', space=vmem, size = 0x1000, scoped, tag = 'input window, operand 1, single buffered']
    #allocation6 [shape = 's32[1]{0}', space=sflag, size = 0x4, scoped, tag = 'scoped memory for tpu_custom_call.1']
    #allocation7 [shape = 'u8[65536]{0}', space=vmem, size = 0x10000, scoped, tag = 'input window, operand 3, single buffered']
    #allocation8 [shape = 'u8[32768]{0}', space=vmem, size = 0x8000, scoped, tag = 'input window, operand 5, single buffered']
    #allocation9 [shape = 's32[1]{0}', space=sflag, size = 0x4, scoped, tag = 'scoped memory for tpu_custom_call.1']
    #allocation10 [shape = 'u8[8192]{0}', space=vmem, size = 0x2000, scoped, tag = 'output window, operand 0, single buffered']
    %12 = vsyncpa [#allocation3], 0
    %13 = vsyncpa [#allocation6], 0
    %14 = vsyncpa [#allocation9], 0
    %15 = vsyncpa [#allocation4], 0
    // Predicated region
    $region2: #{tpu_custom_call.1} parent=1 // pred_check
      _
    $region3: #{tpu_custom_call.1} parent=1 // pred_check_branch
      %17 = sbr.rel (0) target = $region5
    $region4: #{tpu_custom_call.1} parent=1 // pred_region
      %s19 = ssub.s32 128, 128
      %20 = vsyncadd [#allocation3], %s19
      %s21 = sshll.u32 [#allocation2], 4
      %s22 = int_to_ptr.vmem [resolvable:$true] %s21
      %27 = dma.hbm_to_vmem [thread:$0]  %s0, 128, %s22, [#allocation3], 64, 64, 4
    $region5: #{tpu_custom_call.1} parent=1 // pred_fallthru
      _
    // Predicated region
    $region6: #{tpu_custom_call.1} parent=1 // pred_check
      _
    $region7: #{tpu_custom_call.1} parent=1 // pred_check_branch
      %29 = sbr.rel (0) target = $region9
    $region8: #{tpu_custom_call.1} parent=1 // pred_region
      %s31 = ssub.s32 128, 128
      %32 = vsyncadd [#allocation6], %s31
      %s33 = sshll.u32 [#allocation5], 4
      %s34 = int_to_ptr.vmem [resolvable:$true] %s33
      %39 = dma.hbm_to_vmem [thread:$0]  %s1, 128, %s34, [#allocation6], 64, 64, 4
    $region9: #{tpu_custom_call.1} parent=1 // pred_fallthru
      _
    // Predicated region
    $region10: #{tpu_custom_call.1} parent=1 // pred_check
      _
    $region11: #{tpu_custom_call.1} parent=1 // pred_check_branch
      %41 = sbr.rel (0) target = $region13
    $region12: #{tpu_custom_call.1} parent=1 // pred_region
      _
    $region13: #{tpu_custom_call.1} parent=1 // pred_fallthru
      _
    // Predicated region
    $region14: #{tpu_custom_call.1} parent=1 // pred_check
      _
    $region15: #{tpu_custom_call.1} parent=1 // pred_check_branch
      %43 = sbr.rel (0) target = $region17
    $region16: #{tpu_custom_call.1} parent=1 // pred_region
      %s45 = ssub.s32 2048, 2048
      %46 = vsyncadd [#allocation6], %s45
      %s47 = sshll.u32 [#allocation7], 4
      %s48 = int_to_ptr.vmem [resolvable:$true] %s47
      %53 = dma.hbm_to_vmem [thread:$0]  %s3, 2048, %s48, [#allocation6], 64, 64, 4
    $region17: #{tpu_custom_call.1} parent=1 // pred_fallthru
      _
    // Predicated region
    $region18: #{tpu_custom_call.1} parent=1 // pred_check
      _
    $region19: #{tpu_custom_call.1} parent=1 // pred_check_branch
      %55 = sbr.rel (0) target = $region21
    $region20: #{tpu_custom_call.1} parent=1 // pred_region
      _
    $region21: #{tpu_custom_call.1} parent=1 // pred_fallthru
      _
    // Predicated region
    $region22: #{tpu_custom_call.1} parent=1 // pred_check
      _
    $region23: #{tpu_custom_call.1} parent=1 // pred_check_branch
      %57 = sbr.rel (0) target = $region25
    $region24: #{tpu_custom_call.1} parent=1 // pred_region
      %s59 = ssub.s32 1024, 1024
      %60 = vsyncadd [#allocation9], %s59
      %s61 = sshll.u32 [#allocation8], 4
      %s62 = int_to_ptr.vmem [resolvable:$true] %s61
      %67 = dma.hbm_to_vmem [thread:$0]  %s5, 1024, %s62, [#allocation9], 64, 64, 4
    $region25: #{tpu_custom_call.1} parent=1 // pred_fallthru
      _
    // Predicated region
    $region26: #{tpu_custom_call.1} parent=1 // pred_check
      _
    $region27: #{tpu_custom_call.1} parent=1 // pred_check_branch
      %69 = sbr.rel (0) target = $region29
    $region28: #{tpu_custom_call.1} parent=1 // pred_region
      _
    $region29: #{tpu_custom_call.1} parent=1 // pred_fallthru
      _
    // Predicated region
    $region30: #{tpu_custom_call.1} parent=1 // pred_check
      _
    $region31: #{tpu_custom_call.1} parent=1 // pred_check_branch
      %71 = sbr.rel (0) target = $region33
    $region32: #{tpu_custom_call.1} parent=1 // pred_region
      %72 = dma.done [#allocation3], 128
    $region33: #{tpu_custom_call.1} parent=1 // pred_fallthru
      _
    // Predicated region
    $region34: #{tpu_custom_call.1} parent=1 // pred_check
      _
    $region35: #{tpu_custom_call.1} parent=1 // pred_check_branch
      %74 = sbr.rel (0) target = $region37
    $region36: #{tpu_custom_call.1} parent=1 // pred_region
      %75 = dma.done [#allocation6], 128
    $region37: #{tpu_custom_call.1} parent=1 // pred_fallthru
      _
    // Predicated region
    $region38: #{tpu_custom_call.1} parent=1 // pred_check
      _
    $region39: #{tpu_custom_call.1} parent=1 // pred_check_branch
      %77 = sbr.rel (0) target = $region41
    $region40: #{tpu_custom_call.1} parent=1 // pred_region
      %78 = dma.done [#allocation6], 2048
    $region41: #{tpu_custom_call.1} parent=1 // pred_fallthru
      _
    // Predicated region
    $region42: #{tpu_custom_call.1} parent=1 // pred_check
      _
    $region43: #{tpu_custom_call.1} parent=1 // pred_check_branch
      %80 = sbr.rel (0) target = $region45
    $region44: #{tpu_custom_call.1} parent=1 // pred_region
      %81 = dma.done [#allocation9], 1024
    $region45: #{tpu_custom_call.1} parent=1 // pred_fallthru
      _
    %v83 = vld [vmem:[#allocation2] sm:$0xf]
    %v84 = vld [vmem:[#allocation2 + $0x4] sm:$0xf]
    %v85 = vld [vmem:[#allocation5] sm:$0xf]
    %v86 = vld [vmem:[#allocation5 + $0x4] sm:$0x3]
    %v87 = vld [vmem:[%s2] sm:$0x1]
    %v89 = vlaneseq
    %v90 = vshrl.u32 %v89, 7
    %v91 = vsub.s32 0, %v90
    %v92 = vrot.slane %v87, %v91
    %v96 = vunpack.c.l.b16 %v83
    %v97 = vunpack.c.l.b16 %v84
    %v98 = vpack.c.b16 %v97, %v96
    %v101 = vunpack.c.l.b16 %v85
    %v102 = vunpack.c.l.b16 %v86
    %v103 = vpack.c.b16 %v102, %v101
    %vm104 = vcmask 89088
    %v106 = vsel %vm104, %v98, 0
    %vm108 = vcmask 1044480
    %vm109 = vcmask 1045504
    %v110 = vsel %vm108, 4294967295, 65535
    %v111 = vsel %vm109, %v110, 0
    %v113 = vand.u32 %v103, %v111
    %115 = vmatprep.subr.bf16.mxu0 0
    %116 = vmatpush1.bf16.msra.mxu0 %v113
    %117 = vmatprep.subr.bf16.mxu0 0
    %118 = vmatpush1.bf16.msra.mxu0 0
    %119 = vmatprep.subr.bf16.mxu0 0
    %120 = vmatpush1.bf16.msra.mxu0 0
    %121 = vmatprep.subr.bf16.mxu0 0
    %122 = vmatpush1.bf16.msra.mxu0 0
    %123 = vmatprep.subr.bf16.mxu0 0
    %124 = vmatpush1.bf16.msra.mxu0 0
    %125 = vmatprep.subr.bf16.mxu0 0
    %126 = vmatpush1.bf16.msra.mxu0 0
    %127 = vmatprep.subr.bf16.mxu0 0
    %128 = vmatpush1.bf16.msra.mxu0 0
    %129 = vmatprep.subr.bf16.mxu0 0
    %130 = vmatpush1.bf16.msra.mxu0 0
    %131 = vmatprep.subr.bf16.mxu0 0
    %132 = vmatpush1.bf16.msra.mxu0 0
    %133 = vmatprep.subr.bf16.mxu0 0
    %134 = vmatpush1.bf16.msra.mxu0 0
    %135 = vmatprep.subr.bf16.mxu0 0
    %136 = vmatpush1.bf16.msra.mxu0 0
    %137 = vmatprep.subr.bf16.mxu0 0
    %138 = vmatpush1.bf16.msra.mxu0 0
    %139 = vmatprep.subr.bf16.mxu0 0
    %140 = vmatpush1.bf16.msra.mxu0 0
    %141 = vmatprep.subr.bf16.mxu0 0
    %142 = vmatpush1.bf16.msra.mxu0 0
    %143 = vmatprep.subr.bf16.mxu0 0
    %144 = vmatpush1.bf16.msra.mxu0 0
    %145 = vmatprep.subr.bf16.mxu0 0
    %146 = vmatpush1.bf16.msra.mxu0 0
    %147 = vmatprep.mubr.bf16.mxu0 0
    %148 = vmatmul.mubr.bf16.gmra.mrb[0].mxu0 %v106
    %v149 = vpop.f32.mrb[0].mxu0
    %v150 = vadd.f32 %v92, %v149
    %v151 = vpop.f32.mrb[0].mxu0
    %v152 = vpop.f32.mrb[0].mxu0
    %v153 = vadd.f32 %v92, %v152
    %v154 = vpop.f32.mrb[0].mxu0
    %155 = vdwg.mxu0
    %v156 = vmax.f32 %v150, 0.0
    %v157 = vmax.f32 %v153, 0.0
    %v158 = vpack.c.bf16 %v157, %v156
    %v159 = vld [vmem:[#allocation7] sm:$0xf]
    %v160 = vld [vmem:[#allocation7 + $0x4] sm:$0xf]
    %v161 = vld [vmem:[#allocation7 + $0x8] sm:$0xf]
    %v162 = vld [vmem:[#allocation7 + $0xc] sm:$0xf]
    %v163 = vld [vmem:[#allocation7 + $0x10] sm:$0xf]
    %v164 = vld [vmem:[#allocation7 + $0x14] sm:$0xf]
    %v165 = vld [vmem:[#allocation7 + $0x18] sm:$0xf]
    %v166 = vld [vmem:[#allocation7 + $0x1c] sm:$0xf]
    %v167 = vld [vmem:[#allocation7 + $0x20] sm:$0xf]
    %v168 = vld [vmem:[#allocation7 + $0x24] sm:$0xf]
    %v169 = vld [vmem:[#allocation7 + $0x28] sm:$0xf]
    %v170 = vld [vmem:[#allocation7 + $0x2c] sm:$0xf]
    %v171 = vld [vmem:[#allocation7 + $0x30] sm:$0xf]
    %v172 = vld [vmem:[#allocation7 + $0x34] sm:$0xf]
    %v173 = vld [vmem:[#allocation7 + $0x38] sm:$0xf]
    %v174 = vld [vmem:[#allocation7 + $0x3c] sm:$0xf]
    %v175 = vld [vmem:[%s4] sm:$0x1]
    %v177 = vlaneseq
    %v178 = vshrl.u32 %v177, 7
    %v179 = vsub.s32 0, %v178
    %v180 = vrot.slane %v175, %v179
    %v198 = vunpack.c.l.b16 %v159
    %v199 = vunpack.c.l.b16 %v160
    %v200 = vunpack.c.l.b16 %v161
    %v201 = vunpack.c.l.b16 %v162
    %v202 = vunpack.c.l.b16 %v163
    %v203 = vunpack.c.l.b16 %v164
    %v204 = vunpack.c.l.b16 %v165
    %v205 = vunpack.c.l.b16 %v166
    %v206 = vunpack.c.l.b16 %v167
    %v207 = vunpack.c.l.b16 %v168
    %v208 = vunpack.c.l.b16 %v169
    %v209 = vunpack.c.l.b16 %v170
    %v210 = vunpack.c.l.b16 %v171
    %v211 = vunpack.c.l.b16 %v172
    %v212 = vunpack.c.l.b16 %v173
    %v213 = vunpack.c.l.b16 %v174
    %v214 = vpack.c.b16 %v199, %v198
    %v215 = vpack.c.b16 %v201, %v200
    %v216 = vpack.c.b16 %v203, %v202
    %v217 = vpack.c.b16 %v205, %v204
    %v218 = vpack.c.b16 %v207, %v206
    %v219 = vpack.c.b16 %v209, %v208
    %v220 = vpack.c.b16 %v211, %v210
    %v221 = vpack.c.b16 %v213, %v212
    %230 = vmatprep.subr.bf16.mxu0 0
    %231 = vmatpush1.bf16.msra.mxu0 %v214
    %232 = vmatprep.subr.bf16.mxu0 0
    %233 = vmatpush1.bf16.msra.mxu0 %v215
    %234 = vmatprep.subr.bf16.mxu0 0
    %235 = vmatpush1.bf16.msra.mxu0 %v216
    %236 = vmatprep.subr.bf16.mxu0 0
    %237 = vmatpush1.bf16.msra.mxu0 %v217
    %238 = vmatprep.subr.bf16.mxu0 0
    %239 = vmatpush1.bf16.msra.mxu0 %v218
    %240 = vmatprep.subr.bf16.mxu0 0
    %241 = vmatpush1.bf16.msra.mxu0 %v219
    %242 = vmatprep.subr.bf16.mxu0 0
    %243 = vmatpush1.bf16.msra.mxu0 %v220
    %244 = vmatprep.subr.bf16.mxu0 0
    %245 = vmatpush1.bf16.msra.mxu0 %v221
    %246 = vmatprep.subr.bf16.mxu0 0
    %247 = vmatpush1.bf16.msra.mxu0 0
    %248 = vmatprep.subr.bf16.mxu0 0
    %249 = vmatpush1.bf16.msra.mxu0 0
    %250 = vmatprep.subr.bf16.mxu0 0
    %251 = vmatpush1.bf16.msra.mxu0 0
    %252 = vmatprep.subr.bf16.mxu0 0
    %253 = vmatpush1.bf16.msra.mxu0 0
    %254 = vmatprep.subr.bf16.mxu0 0
    %255 = vmatpush1.bf16.msra.mxu0 0
    %256 = vmatprep.subr.bf16.mxu0 0
    %257 = vmatpush1.bf16.msra.mxu0 0
    %258 = vmatprep.subr.bf16.mxu0 0
    %259 = vmatpush1.bf16.msra.mxu0 0
    %260 = vmatprep.subr.bf16.mxu0 0
    %261 = vmatpush1.bf16.msra.mxu0 0
    %262 = vmatprep.mubr.bf16.mxu0 0
    %263 = vmatmul.mubr.bf16.gmra.mrb[0].mxu0 %v158
    %v264 = vpop.f32.mrb[0].mxu0
    %v265 = vadd.f32 %v180, %v264
    %v266 = vpop.f32.mrb[0].mxu0
    %v267 = vpop.f32.mrb[0].mxu0
    %v268 = vadd.f32 %v180, %v267
    %v269 = vpop.f32.mrb[0].mxu0
    %270 = vdwg.mxu0
    %v271 = vmax.f32 %v265, 0.0
    %v272 = vmax.f32 %v268, 0.0
    %v273 = vpack.c.bf16 %v272, %v271
    %s274 = scalar_lea.vmem [#allocation7], 64
    %v275 = vld [vmem:[%s274] sm:$0xf]
    %v276 = vld [vmem:[%s274 + $0x4] sm:$0xf]
    %v277 = vld [vmem:[%s274 + $0x8] sm:$0xf]
    %v278 = vld [vmem:[%s274 + $0xc] sm:$0xf]
    %v279 = vld [vmem:[%s274 + $0x10] sm:$0xf]
    %v280 = vld [vmem:[%s274 + $0x14] sm:$0xf]
    %v281 = vld [vmem:[%s274 + $0x18] sm:$0xf]
    %v282 = vld [vmem:[%s274 + $0x1c] sm:$0xf]
    %v283 = vld [vmem:[%s274 + $0x20] sm:$0xf]
    %v284 = vld [vmem:[%s274 + $0x24] sm:$0xf]
    %v285 = vld [vmem:[%s274 + $0x28] sm:$0xf]
    %v286 = vld [vmem:[%s274 + $0x2c] sm:$0xf]
    %v287 = vld [vmem:[%s274 + $0x30] sm:$0xf]
    %v288 = vld [vmem:[%s274 + $0x34] sm:$0xf]
    %v289 = vld [vmem:[%s274 + $0x38] sm:$0xf]
    %v290 = vld [vmem:[%s274 + $0x3c] sm:$0xf]
    %s291 = scalar_lea.vmem %s4, 1
    %v292 = vld [vmem:[%s291] sm:$0x1]
    %v294 = vlaneseq
    %v295 = vshrl.u32 %v294, 7
    %v296 = vsub.s32 0, %v295
    %v297 = vrot.slane %v292, %v296
    %v315 = vunpack.c.l.b16 %v275
    %v316 = vunpack.c.l.b16 %v276
    %v317 = vunpack.c.l.b16 %v277
    %v318 = vunpack.c.l.b16 %v278
    %v319 = vunpack.c.l.b16 %v279
    %v320 = vunpack.c.l.b16 %v280
    %v321 = vunpack.c.l.b16 %v281
    %v322 = vunpack.c.l.b16 %v282
    %v323 = vunpack.c.l.b16 %v283
    %v324 = vunpack.c.l.b16 %v284
    %v325 = vunpack.c.l.b16 %v285
    %v326 = vunpack.c.l.b16 %v286
    %v327 = vunpack.c.l.b16 %v287
    %v328 = vunpack.c.l.b16 %v288
    %v329 = vunpack.c.l.b16 %v289
    %v330 = vunpack.c.l.b16 %v290
    %v331 = vpack.c.b16 %v316, %v315
    %v332 = vpack.c.b16 %v318, %v317
    %v333 = vpack.c.b16 %v320, %v319
    %v334 = vpack.c.b16 %v322, %v321
    %v335 = vpack.c.b16 %v324, %v323
    %v336 = vpack.c.b16 %v326, %v325
    %v337 = vpack.c.b16 %v328, %v327
    %v338 = vpack.c.b16 %v330, %v329
    %347 = vmatprep.subr.bf16.mxu0 0
    %348 = vmatpush1.bf16.msra.mxu0 %v331
    %349 = vmatprep.subr.bf16.mxu0 0
    %350 = vmatpush1.bf16.msra.mxu0 %v332
    %351 = vmatprep.subr.bf16.mxu0 0
    %352 = vmatpush1.bf16.msra.mxu0 %v333
    %353 = vmatprep.subr.bf16.mxu0 0
    %354 = vmatpush1.bf16.msra.mxu0 %v334
    %355 = vmatprep.subr.bf16.mxu0 0
    %356 = vmatpush1.bf16.msra.mxu0 %v335
    %357 = vmatprep.subr.bf16.mxu0 0
    %358 = vmatpush1.bf16.msra.mxu0 %v336
    %359 = vmatprep.subr.bf16.mxu0 0
    %360 = vmatpush1.bf16.msra.mxu0 %v337
    %361 = vmatprep.subr.bf16.mxu0 0
    %362 = vmatpush1.bf16.msra.mxu0 %v338
    %363 = vmatprep.subr.bf16.mxu0 0
    %364 = vmatpush1.bf16.msra.mxu0 0
    %365 = vmatprep.subr.bf16.mxu0 0
    %366 = vmatpush1.bf16.msra.mxu0 0
    %367 = vmatprep.subr.bf16.mxu0 0
    %368 = vmatpush1.bf16.msra.mxu0 0
    %369 = vmatprep.subr.bf16.mxu0 0
    %370 = vmatpush1.bf16.msra.mxu0 0
    %371 = vmatprep.subr.bf16.mxu0 0
    %372 = vmatpush1.bf16.msra.mxu0 0
    %373 = vmatprep.subr.bf16.mxu0 0
    %374 = vmatpush1.bf16.msra.mxu0 0
    %375 = vmatprep.subr.bf16.mxu0 0
    %376 = vmatpush1.bf16.msra.mxu0 0
    %377 = vmatprep.subr.bf16.mxu0 0
    %378 = vmatpush1.bf16.msra.mxu0 0
    %379 = vmatprep.mubr.bf16.mxu0 0
    %380 = vmatmul.mubr.bf16.gmra.mrb[0].mxu0 %v273
    %v381 = vpop.f32.mrb[0].mxu0
    %v382 = vadd.f32 %v297, %v381
    %v383 = vpop.f32.mrb[0].mxu0
    %v384 = vpop.f32.mrb[0].mxu0
    %v385 = vadd.f32 %v297, %v384
    %v386 = vpop.f32.mrb[0].mxu0
    %387 = vdwg.mxu0
    %v388 = vmax.f32 %v382, 0.0
    %v389 = vmax.f32 %v385, 0.0
    %v390 = vpack.c.bf16 %v389, %v388
    %v391 = vld [vmem:[#allocation8] sm:$0xf]
    %v392 = vld [vmem:[#allocation8 + $0x4] sm:$0xf]
    %v393 = vld [vmem:[#allocation8 + $0x8] sm:$0xf]
    %v394 = vld [vmem:[#allocation8 + $0xc] sm:$0xf]
    %v395 = vld [vmem:[#allocation8 + $0x10] sm:$0xf]
    %v396 = vld [vmem:[#allocation8 + $0x14] sm:$0xf]
    %v397 = vld [vmem:[#allocation8 + $0x18] sm:$0xf]
    %v398 = vld [vmem:[#allocation8 + $0x1c] sm:$0xf]
    %v399 = vld [vmem:[#allocation8 + $0x20] sm:$0xf]
    %v400 = vld [vmem:[#allocation8 + $0x24] sm:$0xf]
    %v401 = vld [vmem:[#allocation8 + $0x28] sm:$0xf]
    %v402 = vld [vmem:[#allocation8 + $0x2c] sm:$0xf]
    %v403 = vld [vmem:[#allocation8 + $0x30] sm:$0xf]
    %v404 = vld [vmem:[#allocation8 + $0x34] sm:$0xf]
    %v405 = vld [vmem:[#allocation8 + $0x38] sm:$0xf]
    %v406 = vld [vmem:[#allocation8 + $0x3c] sm:$0xf]
    %v407 = vld [vmem:[%s6] sm:$0x1]
    %v409 = vlaneseq
    %v410 = vshrl.u32 %v409, 7
    %v411 = vsub.s32 0, %v410
    %v412 = vrot.slane %v407, %v411
    %v430 = vunpack.c.l.b16 %v391
    %v431 = vunpack.c.l.b16 %v392
    %v432 = vunpack.c.l.b16 %v393
    %v433 = vunpack.c.l.b16 %v394
    %v434 = vunpack.c.l.b16 %v395
    %v435 = vunpack.c.l.b16 %v396
    %v436 = vunpack.c.l.b16 %v397
    %v437 = vunpack.c.l.b16 %v398
    %v438 = vunpack.c.l.b16 %v399
    %v439 = vunpack.c.l.b16 %v400
    %v440 = vunpack.c.l.b16 %v401
    %v441 = vunpack.c.l.b16 %v402
    %v442 = vunpack.c.l.b16 %v403
    %v443 = vunpack.c.l.b16 %v404
    %v444 = vunpack.c.l.b16 %v405
    %v445 = vunpack.c.l.b16 %v406
    %v446 = vpack.c.b16 %v431, %v430
    %v447 = vpack.c.b16 %v433, %v432
    %v448 = vpack.c.b16 %v435, %v434
    %v449 = vpack.c.b16 %v437, %v436
    %v450 = vpack.c.b16 %v439, %v438
    %v451 = vpack.c.b16 %v441, %v440
    %v452 = vpack.c.b16 %v443, %v442
    %v453 = vpack.c.b16 %v445, %v444
    %462 = vmatprep.subr.bf16.mxu0 0
    %463 = vmatpush1.bf16.msra.mxu0 %v446
    %464 = vmatprep.subr.bf16.mxu0 0
    %465 = vmatpush1.bf16.msra.mxu0 %v447
    %466 = vmatprep.subr.bf16.mxu0 0
    %467 = vmatpush1.bf16.msra.mxu0 %v448
    %468 = vmatprep.subr.bf16.mxu0 0
    %469 = vmatpush1.bf16.msra.mxu0 %v449
    %470 = vmatprep.subr.bf16.mxu0 0
    %471 = vmatpush1.bf16.msra.mxu0 %v450
    %472 = vmatprep.subr.bf16.mxu0 0
    %473 = vmatpush1.bf16.msra.mxu0 %v451
    %474 = vmatprep.subr.bf16.mxu0 0
    %475 = vmatpush1.bf16.msra.mxu0 %v452
    %476 = vmatprep.subr.bf16.mxu0 0
    %477 = vmatpush1.bf16.msra.mxu0 %v453
    %478 = vmatprep.subr.bf16.mxu0 0
    %479 = vmatpush1.bf16.msra.mxu0 0
    %480 = vmatprep.subr.bf16.mxu0 0
    %481 = vmatpush1.bf16.msra.mxu0 0
    %482 = vmatprep.subr.bf16.mxu0 0
    %483 = vmatpush1.bf16.msra.mxu0 0
    %484 = vmatprep.subr.bf16.mxu0 0
    %485 = vmatpush1.bf16.msra.mxu0 0
    %486 = vmatprep.subr.bf16.mxu0 0
    %487 = vmatpush1.bf16.msra.mxu0 0
    %488 = vmatprep.subr.bf16.mxu0 0
    %489 = vmatpush1.bf16.msra.mxu0 0
    %490 = vmatprep.subr.bf16.mxu0 0
    %491 = vmatpush1.bf16.msra.mxu0 0
    %492 = vmatprep.subr.bf16.mxu0 0
    %493 = vmatpush1.bf16.msra.mxu0 0
    %494 = vmatprep.mubr.bf16.mxu0 0
    %495 = vmatmul.mubr.bf16.gmra.mrb[0].mxu0 %v390
    %v496 = vpop.f32.mrb[0].mxu0
    %v497 = vadd.f32 %v412, %v496
    %v498 = vpop.f32.mrb[0].mxu0
    %v499 = vpop.f32.mrb[0].mxu0
    %v500 = vadd.f32 %v412, %v499
    %v501 = vpop.f32.mrb[0].mxu0
    %502 = vdwg.mxu0
    %503 = vst [vmem:[#allocation10] sm:$0xff] %v497
    %504 = vst [vmem:[#allocation10 + $0x8] sm:$0xff] %v500
    // Predicated region
    $region46: #{tpu_custom_call.1} parent=1 // pred_check
      _
    $region47: #{tpu_custom_call.1} parent=1 // pred_check_branch
      %506 = sbr.rel (0) target = $region49
    $region48: #{tpu_custom_call.1} parent=1 // pred_region
      %s508 = ssub.s32 256, 256
      %509 = vsyncadd [#allocation4], %s508
      %s510 = sshll.u32 [#allocation10], 4
      %s511 = int_to_ptr.vmem [resolvable:$true] %s510
      %516 = dma.vmem_to_hbm [thread:$0]  %s511, 256, %s7, [#allocation4], 128, 128, 8
    $region49: #{tpu_custom_call.1} parent=1 // pred_fallthru
      _
    // Predicated region
    $region50: #{tpu_custom_call.1} parent=1 // pred_check
      _
    $region51: #{tpu_custom_call.1} parent=1 // pred_check_branch
      %518 = sbr.rel (0) target = $region53
    $region52: #{tpu_custom_call.1} parent=1 // pred_region
      %519 = dma.done [#allocation4], 256
    $region53: #{tpu_custom_call.1} parent=1 // pred_fallthru
      _
    %520 = vsyncpa [#allocation3], 1
    %521 = vsyncpa [#allocation6], 1
    %522 = vsyncpa [#allocation9], 1
    %523 = vsyncpa [#allocation4], 1

// kernel: tpu_custom_call.1
$region0: #{tpu_custom_call.1}
  #allocation0 [shape = 'u32[]', space=smem, size = 0x4, offset = 0x4, fixed_abs, tag = 'smem constant byte address 0x4 - core index']
  #allocation1 [shape = 'u32[144,128]{1,0:T(1,128)}', space=vmem, size = 0x12000, scoped, tag = 'internal scratch']
  %s0 = inlined_call_operand.hbm [shape: bf16[16,11], index: 0, kind: input, shape index: {}]
  %s1 = inlined_call_operand.hbm [shape: bf16[11,128], index: 1, kind: input, shape index: {}]
  %s2 = inlined_call_operand.vmem [shape: f32[1,128], index: 2, kind: input, shape index: {}]
  %s3 = inlined_call_operand.hbm [shape: bf16[2,128,128], index: 3, kind: input, shape index: {}]
  %s4 = inlined_call_operand.vmem [shape: f32[2,1,128], index: 4, kind: input, shape index: {}]
  %s5 = inlined_call_operand.hbm [shape: bf16[128,128], index: 5, kind: input, shape index: {}]
  %s6 = inlined_call_operand.vmem [shape: f32[1,128], index: 6, kind: input, shape index: {}]
  %s7 = inlined_call_operand.hbm [shape: f32[16,128], index: 7, kind: output, shape index: {}]
  %s8 = sld [smem:[#allocation0]]
  $region54: #{tpu_custom_call.1} parent=0
    _
  %s10 = ssub.s32 1, %s8
  %s11 = scalar_select 0, %s10, %s8
  $region1: #{tpu_custom_call.1} parent=0
    #allocation2 [shape = 'u8[4096]{0}', space=vmem, size = 0x1000, scoped, tag = 'input window, operand 0, single buffered']
    #allocation3 [shape = 's32[1]{0}', space=sflag, size = 0x4, scoped, tag = 'scoped memory for tpu_custom_call.1']
    #allocation4 [shape = 's32[1]{0}', space=sflag, size = 0x4, scoped, tag = 'scoped memory for tpu_custom_call.1']
    #allocation5 [shape = 'u8[4096]{0}', space=vmem, size = 0x1000, scoped, tag = 'input window, operand 1, single buffered']
    #allocation6 [shape = 's32[1]{0}', space=sflag, size = 0x4, scoped, tag = 'scoped memory for tpu_custom_call.1']
    #allocation7 [shape = 'u8[65536]{0}', space=vmem, size = 0x10000, scoped, tag = 'input window, operand 3, single buffered']
    #allocation8 [shape = 'u8[32768]{0}', space=vmem, size = 0x8000, scoped, tag = 'input window, operand 5, single buffered']
    #allocation9 [shape = 's32[1]{0}', space=sflag, size = 0x4, scoped, tag = 'scoped memory for tpu_custom_call.1']
    #allocation10 [shape = 'u8[8192]{0}', space=vmem, size = 0x2000, scoped, tag = 'output window, operand 0, single buffered']
    %12 = vsyncpa [#allocation3], 0
    %13 = vsyncpa [#allocation6], 0
    %14 = vsyncpa [#allocation9], 0
    %15 = vsyncpa [#allocation4], 0
    // Predicated region
    $region2: #{tpu_custom_call.1} parent=1 // pred_check
      _
    $region3: #{tpu_custom_call.1} parent=1 // pred_check_branch
      %17 = sbr.rel (0) target = $region5
    $region4: #{tpu_custom_call.1} parent=1 // pred_region
      %s19 = ssub.s32 128, 128
      %20 = vsyncadd [#allocation3], %s19
      %s21 = sshll.u32 [#allocation2], 4
      %s22 = int_to_ptr.vmem [resolvable:$true] %s21
      %27 = dma.hbm_to_vmem [thread:$0]  %s0, 128, %s22, [#allocation3], 64, 64, 4
    $region5: #{tpu_custom_call.1} parent=1 // pred_fallthru
      _
    // Predicated region
    $region6: #{tpu_custom_call.1} parent=1 // pred_check
      _
    $region7: #{tpu_custom_call.1} parent=1 // pred_check_branch
      %29 = sbr.rel (0) target = $region9
    $region8: #{tpu_custom_call.1} parent=1 // pred_region
      %s31 = ssub.s32 128, 128
      %32 = vsyncadd [#allocation6], %s31
      %s33 = sshll.u32 [#allocation5], 4
      %s34 = int_to_ptr.vmem [resolvable:$true] %s33
      %39 = dma.hbm_to_vmem [thread:$0]  %s1, 128, %s34, [#allocation6], 64, 64, 4
    $region9: #{tpu_custom_call.1} parent=1 // pred_fallthru
      _
    // Predicated region
    $region10: #{tpu_custom_call.1} parent=1 // pred_check
      _
    $region11: #{tpu_custom_call.1} parent=1 // pred_check_branch
      %41 = sbr.rel (0) target = $region13
    $region12: #{tpu_custom_call.1} parent=1 // pred_region
      _
    $region13: #{tpu_custom_call.1} parent=1 // pred_fallthru
      _
    // Predicated region
    $region14: #{tpu_custom_call.1} parent=1 // pred_check
      _
    $region15: #{tpu_custom_call.1} parent=1 // pred_check_branch
      %43 = sbr.rel (0) target = $region17
    $region16: #{tpu_custom_call.1} parent=1 // pred_region
      %s45 = ssub.s32 2048, 2048
      %46 = vsyncadd [#allocation6], %s45
      %s47 = sshll.u32 [#allocation7], 4
      %s48 = int_to_ptr.vmem [resolvable:$true] %s47
      %53 = dma.hbm_to_vmem [thread:$0]  %s3, 2048, %s48, [#allocation6], 64, 64, 4
    $region17: #{tpu_custom_call.1} parent=1 // pred_fallthru
      _
    // Predicated region
    $region18: #{tpu_custom_call.1} parent=1 // pred_check
      _
    $region19: #{tpu_custom_call.1} parent=1 // pred_check_branch
      %55 = sbr.rel (0) target = $region21
    $region20: #{tpu_custom_call.1} parent=1 // pred_region
      _
    $region21: #{tpu_custom_call.1} parent=1 // pred_fallthru
      _
    // Predicated region
    $region22: #{tpu_custom_call.1} parent=1 // pred_check
      _
    $region23: #{tpu_custom_call.1} parent=1 // pred_check_branch
      %57 = sbr.rel (0) target = $region25
    $region24: #{tpu_custom_call.1} parent=1 // pred_region
      %s59 = ssub.s32 1024, 1024
      %60 = vsyncadd [#allocation9], %s59
      %s61 = sshll.u32 [#allocation8], 4
      %s62 = int_to_ptr.vmem [resolvable:$true] %s61
      %67 = dma.hbm_to_vmem [thread:$0]  %s5, 1024, %s62, [#allocation9], 64, 64, 4
    $region25: #{tpu_custom_call.1} parent=1 // pred_fallthru
      _
    // Predicated region
    $region26: #{tpu_custom_call.1} parent=1 // pred_check
      _
    $region27: #{tpu_custom_call.1} parent=1 // pred_check_branch
      %69 = sbr.rel (0) target = $region29
    $region28: #{tpu_custom_call.1} parent=1 // pred_region
      _
    $region29: #{tpu_custom_call.1} parent=1 // pred_fallthru
      _
    // Predicated region
    $region30: #{tpu_custom_call.1} parent=1 // pred_check
      _
    $region31: #{tpu_custom_call.1} parent=1 // pred_check_branch
      %71 = sbr.rel (0) target = $region33
    $region32: #{tpu_custom_call.1} parent=1 // pred_region
      %72 = dma.done [#allocation3], 128
    $region33: #{tpu_custom_call.1} parent=1 // pred_fallthru
      _
    // Predicated region
    $region34: #{tpu_custom_call.1} parent=1 // pred_check
      _
    $region35: #{tpu_custom_call.1} parent=1 // pred_check_branch
      %74 = sbr.rel (0) target = $region37
    $region36: #{tpu_custom_call.1} parent=1 // pred_region
      %75 = dma.done [#allocation6], 128
    $region37: #{tpu_custom_call.1} parent=1 // pred_fallthru
      _
    // Predicated region
    $region38: #{tpu_custom_call.1} parent=1 // pred_check
      _
    $region39: #{tpu_custom_call.1} parent=1 // pred_check_branch
      %77 = sbr.rel (0) target = $region41
    $region40: #{tpu_custom_call.1} parent=1 // pred_region
      %78 = dma.done [#allocation6], 2048
    $region41: #{tpu_custom_call.1} parent=1 // pred_fallthru
      _
    // Predicated region
    $region42: #{tpu_custom_call.1} parent=1 // pred_check
      _
    $region43: #{tpu_custom_call.1} parent=1 // pred_check_branch
      %80 = sbr.rel (0) target = $region45
    $region44: #{tpu_custom_call.1} parent=1 // pred_region
      %81 = dma.done [#allocation9], 1024
    $region45: #{tpu_custom_call.1} parent=1 // pred_fallthru
      _
    %v83 = vld [vmem:[#allocation2] sm:$0xf]
    %v84 = vld [vmem:[#allocation2 + $0x4] sm:$0xf]
    %v85 = vld [vmem:[#allocation5] sm:$0xf]
    %v86 = vld [vmem:[#allocation5 + $0x4] sm:$0x3]
    %v87 = vld [vmem:[%s2] sm:$0x1]
    %v89 = vlaneseq
    %v90 = vshrl.u32 %v89, 7
    %v91 = vsub.s32 0, %v90
    %v92 = vrot.slane %v87, %v91
    %v96 = vunpack.c.l.b16 %v83
    %v97 = vunpack.c.l.b16 %v84
    %v98 = vpack.c.b16 %v97, %v96
    %v101 = vunpack.c.l.b16 %v85
    %v102 = vunpack.c.l.b16 %v86
    %v103 = vpack.c.b16 %v102, %v101
    %vm104 = vcmask 89088
    %v106 = vsel %vm104, %v98, 0
    %vm108 = vcmask 1044480
    %vm109 = vcmask 1045504
    %v110 = vsel %vm108, 4294967295, 65535
    %v111 = vsel %vm109, %v110, 0
    %v113 = vand.u32 %v103, %v111
    %115 = vmatprep.subr.bf16.mxu0 0
    %116 = vmatpush1.bf16.msra.mxu0 %v113
    %117 = vmatprep.subr.bf16.mxu0 0
    %118 = vmatpush1.bf16.msra.mxu0 0
    %119 = vmatprep.subr.bf16.mxu0 0
    %120 = vmatpush1.bf16.msra.mxu0 0
    %121 = vmatprep.subr.bf16.mxu0 0
    %122 = vmatpush1.bf16.msra.mxu0 0
    %123 = vmatprep.subr.bf16.mxu0 0
    %124 = vmatpush1.bf16.msra.mxu0 0
    %125 = vmatprep.subr.bf16.mxu0 0
    %126 = vmatpush1.bf16.msra.mxu0 0
    %127 = vmatprep.subr.bf16.mxu0 0
    %128 = vmatpush1.bf16.msra.mxu0 0
    %129 = vmatprep.subr.bf16.mxu0 0
    %130 = vmatpush1.bf16.msra.mxu0 0
    %131 = vmatprep.subr.bf16.mxu0 0
    %132 = vmatpush1.bf16.msra.mxu0 0
    %133 = vmatprep.subr.bf16.mxu0 0
    %134 = vmatpush1.bf16.msra.mxu0 0
    %135 = vmatprep.subr.bf16.mxu0 0
    %136 = vmatpush1.bf16.msra.mxu0 0
    %137 = vmatprep.subr.bf16.mxu0 0
    %138 = vmatpush1.bf16.msra.mxu0 0
    %139 = vmatprep.subr.bf16.mxu0 0
    %140 = vmatpush1.bf16.msra.mxu0 0
    %141 = vmatprep.subr.bf16.mxu0 0
    %142 = vmatpush1.bf16.msra.mxu0 0
    %143 = vmatprep.subr.bf16.mxu0 0
    %144 = vmatpush1.bf16.msra.mxu0 0
    %145 = vmatprep.subr.bf16.mxu0 0
    %146 = vmatpush1.bf16.msra.mxu0 0
    %147 = vmatprep.mubr.bf16.mxu0 0
    %148 = vmatmul.mubr.bf16.gmra.mrb[0].mxu0 %v106
    %v149 = vpop.f32.mrb[0].mxu0
    %v150 = vadd.f32 %v92, %v149
    %v151 = vpop.f32.mrb[0].mxu0
    %v152 = vpop.f32.mrb[0].mxu0
    %v153 = vadd.f32 %v92, %v152
    %v154 = vpop.f32.mrb[0].mxu0
    %155 = vdwg.mxu0
    %v156 = vmax.f32 %v150, 0.0
    %v157 = vmax.f32 %v153, 0.0
    %v158 = vpack.c.bf16 %v157, %v156
    %v159 = vld [vmem:[#allocation7] sm:$0xf]
    %v160 = vld [vmem:[#allocation7 + $0x4] sm:$0xf]
    %v161 = vld [vmem:[#allocation7 + $0x8] sm:$0xf]
    %v162 = vld [vmem:[#allocation7 + $0xc] sm:$0xf]
    %v163 = vld [vmem:[#allocation7 + $0x10] sm:$0xf]
    %v164 = vld [vmem:[#allocation7 + $0x14] sm:$0xf]
    %v165 = vld [vmem:[#allocation7 + $0x18] sm:$0xf]
    %v166 = vld [vmem:[#allocation7 + $0x1c] sm:$0xf]
    %v167 = vld [vmem:[#allocation7 + $0x20] sm:$0xf]
    %v168 = vld [vmem:[#allocation7 + $0x24] sm:$0xf]
    %v169 = vld [vmem:[#allocation7 + $0x28] sm:$0xf]
    %v170 = vld [vmem:[#allocation7 + $0x2c] sm:$0xf]
    %v171 = vld [vmem:[#allocation7 + $0x30] sm:$0xf]
    %v172 = vld [vmem:[#allocation7 + $0x34] sm:$0xf]
    %v173 = vld [vmem:[#allocation7 + $0x38] sm:$0xf]
    %v174 = vld [vmem:[#allocation7 + $0x3c] sm:$0xf]
    %v175 = vld [vmem:[%s4] sm:$0x1]
    %v177 = vlaneseq
    %v178 = vshrl.u32 %v177, 7
    %v179 = vsub.s32 0, %v178
    %v180 = vrot.slane %v175, %v179
    %v198 = vunpack.c.l.b16 %v159
    %v199 = vunpack.c.l.b16 %v160
    %v200 = vunpack.c.l.b16 %v161
    %v201 = vunpack.c.l.b16 %v162
    %v202 = vunpack.c.l.b16 %v163
    %v203 = vunpack.c.l.b16 %v164
    %v204 = vunpack.c.l.b16 %v165
    %v205 = vunpack.c.l.b16 %v166
    %v206 = vunpack.c.l.b16 %v167
    %v207 = vunpack.c.l.b16 %v168
    %v208 = vunpack.c.l.b16 %v169
    %v209 = vunpack.c.l.b16 %v170
    %v210 = vunpack.c.l.b16 %v171
    %v211 = vunpack.c.l.b16 %v172
    %v212 = vunpack.c.l.b16 %v173
    %v213 = vunpack.c.l.b16 %v174
    %v214 = vpack.c.b16 %v199, %v198
    %v215 = vpack.c.b16 %v201, %v200
    %v216 = vpack.c.b16 %v203, %v202
    %v217 = vpack.c.b16 %v205, %v204
    %v218 = vpack.c.b16 %v207, %v206
    %v219 = vpack.c.b16 %v209, %v208
    %v220 = vpack.c.b16 %v211, %v210
    %v221 = vpack.c.b16 %v213, %v212
    %230 = vmatprep.subr.bf16.mxu0 0
    %231 = vmatpush1.bf16.msra.mxu0 %v214
    %232 = vmatprep.subr.bf16.mxu0 0
    %233 = vmatpush1.bf16.msra.mxu0 %v215
    %234 = vmatprep.subr.bf16.mxu0 0
    %235 = vmatpush1.bf16.msra.mxu0 %v216
    %236 = vmatprep.subr.bf16.mxu0 0
    %237 = vmatpush1.bf16.msra.mxu0 %v217
    %238 = vmatprep.subr.bf16.mxu0 0
    %239 = vmatpush1.bf16.msra.mxu0 %v218
    %240 = vmatprep.subr.bf16.mxu0 0
    %241 = vmatpush1.bf16.msra.mxu0 %v219
    %242 = vmatprep.subr.bf16.mxu0 0
    %243 = vmatpush1.bf16.msra.mxu0 %v220
    %244 = vmatprep.subr.bf16.mxu0 0
    %245 = vmatpush1.bf16.msra.mxu0 %v221
    %246 = vmatprep.subr.bf16.mxu0 0
    %247 = vmatpush1.bf16.msra.mxu0 0
    %248 = vmatprep.subr.bf16.mxu0 0
    %249 = vmatpush1.bf16.msra.mxu0 0
    %250 = vmatprep.subr.bf16.mxu0 0
    %251 = vmatpush1.bf16.msra.mxu0 0
    %252 = vmatprep.subr.bf16.mxu0 0
    %253 = vmatpush1.bf16.msra.mxu0 0
    %254 = vmatprep.subr.bf16.mxu0 0
    %255 = vmatpush1.bf16.msra.mxu0 0
    %256 = vmatprep.subr.bf16.mxu0 0
    %257 = vmatpush1.bf16.msra.mxu0 0
    %258 = vmatprep.subr.bf16.mxu0 0
    %259 = vmatpush1.bf16.msra.mxu0 0
    %260 = vmatprep.subr.bf16.mxu0 0
    %261 = vmatpush1.bf16.msra.mxu0 0
    %262 = vmatprep.mubr.bf16.mxu0 0
    %263 = vmatmul.mubr.bf16.gmra.mrb[0].mxu0 %v158
    %v264 = vpop.f32.mrb[0].mxu0
    %v265 = vadd.f32 %v180, %v264
    %v266 = vpop.f32.mrb[0].mxu0
    %v267 = vpop.f32.mrb[0].mxu0
    %v268 = vadd.f32 %v180, %v267
    %v269 = vpop.f32.mrb[0].mxu0
    %270 = vdwg.mxu0
    %v271 = vmax.f32 %v265, 0.0
    %v272 = vmax.f32 %v268, 0.0
    %v273 = vpack.c.bf16 %v272, %v271
    %s274 = scalar_lea.vmem [#allocation7], 64
    %v275 = vld [vmem:[%s274] sm:$0xf]
    %v276 = vld [vmem:[%s274 + $0x4] sm:$0xf]
    %v277 = vld [vmem:[%s274 + $0x8] sm:$0xf]
    %v278 = vld [vmem:[%s274 + $0xc] sm:$0xf]
    %v279 = vld [vmem:[%s274 + $0x10] sm:$0xf]
    %v280 = vld [vmem:[%s274 + $0x14] sm:$0xf]
    %v281 = vld [vmem:[%s274 + $0x18] sm:$0xf]
    %v282 = vld [vmem:[%s274 + $0x1c] sm:$0xf]
    %v283 = vld [vmem:[%s274 + $0x20] sm:$0xf]
    %v284 = vld [vmem:[%s274 + $0x24] sm:$0xf]
    %v285 = vld [vmem:[%s274 + $0x28] sm:$0xf]
    %v286 = vld [vmem:[%s274 + $0x2c] sm:$0xf]
    %v287 = vld [vmem:[%s274 + $0x30] sm:$0xf]
    %v288 = vld [vmem:[%s274 + $0x34] sm:$0xf]
    %v289 = vld [vmem:[%s274 + $0x38] sm:$0xf]
    %v290 = vld [vmem:[%s274 + $0x3c] sm:$0xf]
    %s291 = scalar_lea.vmem %s4, 1
    %v292 = vld [vmem:[%s291] sm:$0x1]
    %v294 = vlaneseq
    %v295 = vshrl.u32 %v294, 7
    %v296 = vsub.s32 0, %v295
    %v297 = vrot.slane %v292, %v296
    %v315 = vunpack.c.l.b16 %v275
    %v316 = vunpack.c.l.b16 %v276
    %v317 = vunpack.c.l.b16 %v277
    %v318 = vunpack.c.l.b16 %v278
    %v319 = vunpack.c.l.b16 %v279
    %v320 = vunpack.c.l.b16 %v280
    %v321 = vunpack.c.l.b16 %v281
    %v322 = vunpack.c.l.b16 %v282
    %v323 = vunpack.c.l.b16 %v283
    %v324 = vunpack.c.l.b16 %v284
    %v325 = vunpack.c.l.b16 %v285
    %v326 = vunpack.c.l.b16 %v286
    %v327 = vunpack.c.l.b16 %v287
    %v328 = vunpack.c.l.b16 %v288
    %v329 = vunpack.c.l.b16 %v289
    %v330 = vunpack.c.l.b16 %v290
    %v331 = vpack.c.b16 %v316, %v315
    %v332 = vpack.c.b16 %v318, %v317
    %v333 = vpack.c.b16 %v320, %v319
    %v334 = vpack.c.b16 %v322, %v321
    %v335 = vpack.c.b16 %v324, %v323
    %v336 = vpack.c.b16 %v326, %v325
    %v337 = vpack.c.b16 %v328, %v327
    %v338 = vpack.c.b16 %v330, %v329
    %347 = vmatprep.subr.bf16.mxu0 0
    %348 = vmatpush1.bf16.msra.mxu0 %v331
    %349 = vmatprep.subr.bf16.mxu0 0
    %350 = vmatpush1.bf16.msra.mxu0 %v332
    %351 = vmatprep.subr.bf16.mxu0 0
    %352 = vmatpush1.bf16.msra.mxu0 %v333
    %353 = vmatprep.subr.bf16.mxu0 0
    %354 = vmatpush1.bf16.msra.mxu0 %v334
    %355 = vmatprep.subr.bf16.mxu0 0
    %356 = vmatpush1.bf16.msra.mxu0 %v335
    %357 = vmatprep.subr.bf16.mxu0 0
    %358 = vmatpush1.bf16.msra.mxu0 %v336
    %359 = vmatprep.subr.bf16.mxu0 0
    %360 = vmatpush1.bf16.msra.mxu0 %v337
    %361 = vmatprep.subr.bf16.mxu0 0
    %362 = vmatpush1.bf16.msra.mxu0 %v338
    %363 = vmatprep.subr.bf16.mxu0 0
    %364 = vmatpush1.bf16.msra.mxu0 0
    %365 = vmatprep.subr.bf16.mxu0 0
    %366 = vmatpush1.bf16.msra.mxu0 0
    %367 = vmatprep.subr.bf16.mxu0 0
    %368 = vmatpush1.bf16.msra.mxu0 0
    %369 = vmatprep.subr.bf16.mxu0 0
    %370 = vmatpush1.bf16.msra.mxu0 0
    %371 = vmatprep.subr.bf16.mxu0 0
    %372 = vmatpush1.bf16.msra.mxu0 0
    %373 = vmatprep.subr.bf16.mxu0 0
    %374 = vmatpush1.bf16.msra.mxu0 0
    %375 = vmatprep.subr.bf16.mxu0 0
    %376 = vmatpush1.bf16.msra.mxu0 0
    %377 = vmatprep.subr.bf16.mxu0 0
    %378 = vmatpush1.bf16.msra.mxu0 0
    %379 = vmatprep.mubr.bf16.mxu0 0
    %380 = vmatmul.mubr.bf16.gmra.mrb[0].mxu0 %v273
    %v381 = vpop.f32.mrb[0].mxu0
    %v382 = vadd.f32 %v297, %v381
    %v383 = vpop.f32.mrb[0].mxu0
    %v384 = vpop.f32.mrb[0].mxu0
    %v385 = vadd.f32 %v297, %v384
    %v386 = vpop.f32.mrb[0].mxu0
    %387 = vdwg.mxu0
    %v388 = vmax.f32 %v382, 0.0
    %v389 = vmax.f32 %v385, 0.0
    %v390 = vpack.c.bf16 %v389, %v388
    %v391 = vld [vmem:[#allocation8] sm:$0xf]
    %v392 = vld [vmem:[#allocation8 + $0x4] sm:$0xf]
    %v393 = vld [vmem:[#allocation8 + $0x8] sm:$0xf]
    %v394 = vld [vmem:[#allocation8 + $0xc] sm:$0xf]
    %v395 = vld [vmem:[#allocation8 + $0x10] sm:$0xf]
    %v396 = vld [vmem:[#allocation8 + $0x14] sm:$0xf]
    %v397 = vld [vmem:[#allocation8 + $0x18] sm:$0xf]
    %v398 = vld [vmem:[#allocation8 + $0x1c] sm:$0xf]
    %v399 = vld [vmem:[#allocation8 + $0x20] sm:$0xf]
    %v400 = vld [vmem:[#allocation8 + $0x24] sm:$0xf]
    %v401 = vld [vmem:[#allocation8 + $0x28] sm:$0xf]
    %v402 = vld [vmem:[#allocation8 + $0x2c] sm:$0xf]
    %v403 = vld [vmem:[#allocation8 + $0x30] sm:$0xf]
    %v404 = vld [vmem:[#allocation8 + $0x34] sm:$0xf]
    %v405 = vld [vmem:[#allocation8 + $0x38] sm:$0xf]
    %v406 = vld [vmem:[#allocation8 + $0x3c] sm:$0xf]
    %v407 = vld [vmem:[%s6] sm:$0x1]
    %v409 = vlaneseq
    %v410 = vshrl.u32 %v409, 7
    %v411 = vsub.s32 0, %v410
    %v412 = vrot.slane %v407, %v411
    %v430 = vunpack.c.l.b16 %v391
    %v431 = vunpack.c.l.b16 %v392
    %v432 = vunpack.c.l.b16 %v393
    %v433 = vunpack.c.l.b16 %v394
    %v434 = vunpack.c.l.b16 %v395
    %v435 = vunpack.c.l.b16 %v396
    %v436 = vunpack.c.l.b16 %v397
    %v437 = vunpack.c.l.b16 %v398
    %v438 = vunpack.c.l.b16 %v399
    %v439 = vunpack.c.l.b16 %v400
    %v440 = vunpack.c.l.b16 %v401
    %v441 = vunpack.c.l.b16 %v402
    %v442 = vunpack.c.l.b16 %v403
    %v443 = vunpack.c.l.b16 %v404
    %v444 = vunpack.c.l.b16 %v405
    %v445 = vunpack.c.l.b16 %v406
    %v446 = vpack.c.b16 %v431, %v430
    %v447 = vpack.c.b16 %v433, %v432
    %v448 = vpack.c.b16 %v435, %v434
    %v449 = vpack.c.b16 %v437, %v436
    %v450 = vpack.c.b16 %v439, %v438
    %v451 = vpack.c.b16 %v441, %v440
    %v452 = vpack.c.b16 %v443, %v442
    %v453 = vpack.c.b16 %v445, %v444
    %462 = vmatprep.subr.bf16.mxu0 0
    %463 = vmatpush1.bf16.msra.mxu0 %v446
    %464 = vmatprep.subr.bf16.mxu0 0
    %465 = vmatpush1.bf16.msra.mxu0 %v447
    %466 = vmatprep.subr.bf16.mxu0 0
    %467 = vmatpush1.bf16.msra.mxu0 %v448
    %468 = vmatprep.subr.bf16.mxu0 0
    %469 = vmatpush1.bf16.msra.mxu0 %v449
    %470 = vmatprep.subr.bf16.mxu0 0
    %471 = vmatpush1.bf16.msra.mxu0 %v450
    %472 = vmatprep.subr.bf16.mxu0 0
    %473 = vmatpush1.bf16.msra.mxu0 %v451
    %474 = vmatprep.subr.bf16.mxu0 0
    %475 = vmatpush1.bf16.msra.mxu0 %v452
    %476 = vmatprep.subr.bf16.mxu0 0
    %477 = vmatpush1.bf16.msra.mxu0 %v453
    %478 = vmatprep.subr.bf16.mxu0 0
    %479 = vmatpush1.bf16.msra.mxu0 0
    %480 = vmatprep.subr.bf16.mxu0 0
    %481 = vmatpush1.bf16.msra.mxu0 0
    %482 = vmatprep.subr.bf16.mxu0 0
    %483 = vmatpush1.bf16.msra.mxu0 0
    %484 = vmatprep.subr.bf16.mxu0 0
    %485 = vmatpush1.bf16.msra.mxu0 0
    %486 = vmatprep.subr.bf16.mxu0 0
    %487 = vmatpush1.bf16.msra.mxu0 0
    %488 = vmatprep.subr.bf16.mxu0 0
    %489 = vmatpush1.bf16.msra.mxu0 0
    %490 = vmatprep.subr.bf16.mxu0 0
    %491 = vmatpush1.bf16.msra.mxu0 0
    %492 = vmatprep.subr.bf16.mxu0 0
    %493 = vmatpush1.bf16.msra.mxu0 0
    %494 = vmatprep.mubr.bf16.mxu0 0
    %495 = vmatmul.mubr.bf16.gmra.mrb[0].mxu0 %v390
    %v496 = vpop.f32.mrb[0].mxu0
    %v497 = vadd.f32 %v412, %v496
    %v498 = vpop.f32.mrb[0].mxu0
    %v499 = vpop.f32.mrb[0].mxu0
    %v500 = vadd.f32 %v412, %v499
    %v501 = vpop.f32.mrb[0].mxu0
    %502 = vdwg.mxu0
    %503 = vst [vmem:[#allocation10] sm:$0xff] %v497
    %504 = vst [vmem:[#allocation10 + $0x8] sm:$0xff] %v500
    // Predicated region
    $region46: #{tpu_custom_call.1} parent=1 // pred_check
      _
    $region47: #{tpu_custom_call.1} parent=1 // pred_check_branch
      %506 = sbr.rel (0) target = $region49
    $region48: #{tpu_custom_call.1} parent=1 // pred_region
      %s508 = ssub.s32 256, 256
      %509 = vsyncadd [#allocation4], %s508
      %s510 = sshll.u32 [#allocation10], 4
      %s511 = int_to_ptr.vmem [resolvable:$true] %s510
      %516 = dma.vmem_to_hbm [thread:$0]  %s511, 256, %s7, [#allocation4], 128, 128, 8
    $region49: #{tpu_custom_call.1} parent=1 // pred_fallthru
      _
    // Predicated region
    $region50: #{tpu_custom_call.1} parent=1 // pred_check
      _
    $region51: #{tpu_custom_call.1} parent=1 // pred_check_branch
      %518 = sbr.rel (0) target = $region53
    $region52: #{tpu_custom_call.1} parent=1 // pred_region
      %519 = dma.done [#allocation4], 256
    $region53: #{tpu_custom_call.1} parent=1 // pred_fallthru
      _
    %520 = vsyncpa [#allocation3], 1
    %521 = vsyncpa [#allocation6], 1
    %522 = vsyncpa [#allocation9], 1
    %523 = vsyncpa [#allocation4], 1

</llo_original>
